<compile_context>
chip_gen: v5e
topology: v5e:2x2
jax: 0.10.0
libtpu: 0.0.40
codegen_flags: <defaults>
</compile_context>

<pallas_src>
from functools import partial

import jax
import jax.numpy as jnp
import numpy as np
from jax.experimental import pallas as pl
from jax.experimental.pallas import tpu as pltpu


def abae_kernel(e_ref, m_ref, w_ref, b_ref, nt_ref, out_ref):
    e = e_ref[...]                                            # [TB, L, Dp] native dtype

    # --- get_mask: max(|e|) over D >= 1e-6 (PAD tokens are exactly zero) ---
    # TODO(synk): if sequence lengths were a model input, scalar-prefetch them and
    # build the mask from an iota instead (saves the abs + cross-lane max).
    mask = (jnp.max(jnp.abs(e), axis=-1) >= 1e-6).astype(jnp.float32)   # [TB, L]

    # --- y_s = masked_mean(e_w, mask, dim=1), f32 accumulate; guard all-pad rows ---
    n_tok = jnp.maximum(jnp.sum(mask, axis=1, keepdims=True), 1.0)      # [TB, 1]
    y_s = jnp.sum(e.astype(jnp.float32), axis=1) / n_tok                # [TB, Dp]

    # --- linM(y_s) = y_s @ M^T (MXU, params already in compute dtype) ---
    my = jax.lax.dot_general(
        y_s.astype(e.dtype), m_ref[...],
        dimension_numbers=(((1,), (1,)), ((), ())),
        preferred_element_type=jnp.float32)                             # [TB, Dp]

    # --- di[b,l] = <e[b,l,:], my[b,:]>  : VPU multiply + one cross-lane reduce ---
    di = jnp.sum(e * my[:, None, :], axis=-1)                           # [TB, L] f32

    # --- masked softmax over L (overflow protected); denominator on EUP ---
    d_max = jnp.max(di, axis=1, keepdims=True)
    d_exp = jnp.exp(di - d_max) * mask
    denom = jnp.maximum(jnp.sum(d_exp, axis=1, keepdims=True), 1e-30)
    a = d_exp * pl.reciprocal(denom, approx=True)                       # [TB, L]

    # --- z_s[b,:] = sum_l a[b,l] * e[b,l,:]  : VPU multiply + sublane reduce ---
    z_s = jnp.sum(a[:, :, None] * e, axis=1)                            # [TB, Dp] f32

    # --- p_t = softmax(linW(z_s)), exact divide (tiny [TB, K]) ---
    logits = jax.lax.dot_general(
        z_s.astype(e.dtype), w_ref[...],
        dimension_numbers=(((1,), (1,)), ((), ())),
        preferred_element_type=jnp.float32) + b_ref[...]                # [TB, K]
    l_max = jnp.max(logits, axis=1, keepdims=True)
    l_exp = jnp.exp(logits - l_max)
    p_t = l_exp / jnp.sum(l_exp, axis=1, keepdims=True)                 # [TB, K]

    # --- r_s = p_t @ normed_t^T (normed_t column-normalized + padded in wrapper) ---
    r_s = jax.lax.dot_general(
        p_t, nt_ref[...],
        dimension_numbers=(((1,), (1,)), ((), ())),
        preferred_element_type=jnp.float32)                             # [TB, Dp]

    # Single lane-dense store of the combined [TB, 2*Dp] slab: z_s | r_s.
    out_ref[...] = jnp.concatenate([z_s, r_s], axis=-1).astype(out_ref.dtype)


def _round_up(x, m):
    return ((x + m - 1) // m) * m


def _vmem_capacity_bytes():
    try:
        return int(pltpu.get_tpu_info().vmem_capacity_bytes)
    except Exception:
        return 64 * (1 << 20)   # conservative (v7x per-core) -> safe everywhere


def _pick_batch_tile(B, L, Dp, itemsize, vmem_cap_bytes):
    """Generation-aware batch tile. Budget accounts for double-buffering plus a few
    full-block f32 temporaries inside the kernel body."""
    row_bytes = L * Dp * max(4, itemsize)     # f32-equivalent (temps are f32)
    if vmem_cap_bytes >= 100 * (1 << 20):     # v5e / v6e: 128 MiB physical VMEM
        budget = 14 * (1 << 20)
        min_blocks = 1
    else:                                     # v7x: 64 MiB per TensorCore
        budget = 6 * (1 << 20)
        min_blocks = 2                        # keep both TCs busy + DMA/compute overlap
    tb = max(1, budget // max(1, row_bytes))
    tb = min(tb, B)
    if min_blocks > 1:
        tb = min(tb, pl.cdiv(B, min_blocks))
    if tb < B:
        # Output block is 2-D (tb, 2*Dp): its sublane dim must be a multiple of 8
        # when it does not span the full batch.
        tb = min(B, max(8, (tb // 8) * 8))
    return int(tb)


@partial(jax.jit, static_argnames=("tb", "dp", "vmem_limit"))
def _abae_forward_impl(e_w, M, W, b, T, *, tb, dp, vmem_limit):
    B, L, D = e_w.shape
    K = W.shape[0]
    cdt = e_w.dtype     # MXU compute dtype (bf16 stays bf16, f32 stays f32)

    # Per-parameter constant: column-normalized aspect matrix (hoisted out of kernel).
    normed_t = T.astype(jnp.float32)
    normed_t = normed_t / jnp.sqrt(jnp.sum(normed_t * normed_t, axis=0, keepdims=True))

    # Zero-pad the embedding dim to a lane multiple (zero columns don't change
    # sums, maxes or dot contributions).
    pad_d = dp - D
    if pad_d:
        e_w = jnp.pad(e_w, ((0, 0), (0, 0), (0, pad_d)))
        M = jnp.pad(M, ((0, pad_d), (0, pad_d)))
        W = jnp.pad(W, ((0, 0), (0, pad_d)))
        normed_t = jnp.pad(normed_t, ((0, pad_d), (0, 0)))

    M = M.astype(cdt)                       # cast params ONCE (no in-kernel upcast)
    W = W.astype(cdt)
    b2 = b.reshape(1, K).astype(jnp.float32)
    normed_t = normed_t.astype(jnp.float32)

    grid = (pl.cdiv(B, tb),)

    out = pl.pallas_call(
        abae_kernel,
        out_shape=jax.ShapeDtypeStruct((B, 2 * dp), jnp.float32),
        grid_spec=pltpu.PrefetchScalarGridSpec(
            num_scalar_prefetch=0,
            grid=grid,
            in_specs=[
                pl.BlockSpec((tb, L, dp), lambda i: (i, 0, 0)),   # e_w: batch-tiled
                pl.BlockSpec((dp, dp), lambda i: (0, 0)),         # M: resident
                pl.BlockSpec((K, dp), lambda i: (0, 0)),          # W: resident
                pl.BlockSpec((1, K), lambda i: (0, 0)),           # b: resident
                pl.BlockSpec((dp, K), lambda i: (0, 0)),          # normed_t: resident
            ],
            out_specs=pl.BlockSpec((tb, 2 * dp), lambda i: (i, 0)),
        ),
        compiler_params=pltpu.CompilerParams(
            dimension_semantics=("parallel",),   # shards batch across v7x's 2 TCs
            vmem_limit_bytes=vmem_limit,
        ),
    )(e_w, M, W, b2, normed_t)
    return out[:, :D], out[:, dp:dp + D]


def abae_forward(e_w, M, W, b, T):
    B, L, D = e_w.shape
    dp = _round_up(D, 128)
    vmem_cap = _vmem_capacity_bytes()
    tb = _pick_batch_tile(B, L, dp, e_w.dtype.itemsize, vmem_cap)
    vmem_limit = 96 * (1 << 20) if vmem_cap >= 100 * (1 << 20) else 40 * (1 << 20)
    return _abae_forward_impl(e_w, M, W, b, T, tb=tb, dp=dp, vmem_limit=vmem_limit)


def reference_forward(e, M, W, b, T):
    max_abs = jnp.max(jnp.abs(e), axis=-1, keepdims=True)
    mask = (max_abs >= 1e-6).astype(jnp.float32)
    y_s = jnp.sum(e, axis=1) / jnp.sum(mask, axis=1)
    my = y_s @ M.T
    di = jnp.einsum('bld,bd->bl', e, my)
    m2 = mask[..., 0]
    dmax = jnp.max(di, axis=1, keepdims=True)
    dexp = jnp.exp(di - dmax) * m2
    a = dexp / jnp.sum(dexp, axis=1, keepdims=True)
    z = jnp.einsum('bl,bld->bd', a, e)
    p = jax.nn.softmax(z @ W.T + b, axis=1)
    nt = T / jnp.sqrt(jnp.sum(T * T, axis=0, keepdims=True))
    r = p @ nt.T
    return z, r


if __name__ == "__main__":
    # Small shapes consistent with the module: batch=2, max_length=8, dim_emb=32, K=4
    B, L, D, K = 2, 8, 32, 4
    key = jax.random.PRNGKey(0)
    k1, k2, k3, k4, k5 = jax.random.split(key, 5)

    e_w = jax.random.normal(k1, (B, L, D), dtype=jnp.float32)
    # Mark trailing tokens as padding (zeros), as the module assumes.
    lengths = jnp.array([5, 7])
    pos = jnp.arange(L)[None, :]
    pad = (pos < lengths[:, None]).astype(jnp.float32)[:, :, None]
    e_w = e_w * pad

    # Deterministic parameter init (matches shapes from __init__).
    bound = 1.0 / np.sqrt(D)
    M = jax.random.uniform(k2, (D, D), minval=-bound, maxval=bound, dtype=jnp.float32)
    W = jax.random.uniform(k3, (K, D), minval=-bound, maxval=bound, dtype=jnp.float32)
    b = jax.random.uniform(k4, (K,), minval=-bound, maxval=bound, dtype=jnp.float32)
    T = jax.random.uniform(k5, (D, K), dtype=jnp.float32)   # torch.rand(dim_emb, K)

    z_s, r_s = jax.block_until_ready(abae_forward(e_w, M, W, b, T))

    z_ref, r_ref = reference_forward(e_w, M, W, b, T)
    # Tolerance accounts for the EUP approx-reciprocal attention-softmax denominator.
    assert np.allclose(np.asarray(z_s), np.asarray(z_ref), rtol=5e-3, atol=5e-3)
    assert np.allclose(np.asarray(r_s), np.asarray(r_ref), rtol=5e-3, atol=5e-3)

    print("KERNEL_OK")
</pallas_src>

<mosaic_0001>
module attributes {stable_mosaic.version = 11 : i64} {
  func.func @abae_kernel(%arg0: i32, %arg1: memref<2x8x128xf32, #tpu.memory_space<vmem>>, %arg2: memref<128x128xf32, #tpu.memory_space<vmem>>, %arg3: memref<4x128xf32, #tpu.memory_space<vmem>>, %arg4: memref<1x4xf32, #tpu.memory_space<vmem>>, %arg5: memref<128x4xf32, #tpu.memory_space<vmem>>, %arg6: memref<2x256xf32, #tpu.memory_space<vmem>>) attributes {dimension_semantics = [#tpu.dimension_semantics<parallel>], iteration_bounds = array<i64: 1>, scalar_prefetch = 0 : i64, scratch_operands = 0 : i64, tpu.core_type = #tpu.core_type<tc>, window_params = [{transform_indices = @transform_0, window_bounds = array<i64: 2, 8, 128>}, {pipeline_mode = #tpu.pipeline_mode<synchronous>, transform_indices = @transform_1, window_bounds = array<i64: 128, 128>}, {pipeline_mode = #tpu.pipeline_mode<synchronous>, transform_indices = @transform_2, window_bounds = array<i64: 4, 128>}, {pipeline_mode = #tpu.pipeline_mode<synchronous>, transform_indices = @transform_3, window_bounds = array<i64: 1, 4>}, {pipeline_mode = #tpu.pipeline_mode<synchronous>, transform_indices = @transform_4, window_bounds = array<i64: 128, 4>}, {transform_indices = @transform_5, window_bounds = array<i64: 2, 256>}]} {
    %c0 = arith.constant 0 : index
    %c0_0 = arith.constant 0 : index
    %c0_1 = arith.constant 0 : index
    %0 = vector.load %arg1[%c0, %c0_0, %c0_1] : memref<2x8x128xf32, #tpu.memory_space<vmem>>, vector<2x8x128xf32>
    %1 = math.absf %0 : vector<2x8x128xf32>
    %cst = arith.constant dense<0xFF800000> : vector<2x8xf32>
    %2 = vector.multi_reduction <maximumf>, %1, %cst [2] : vector<2x8x128xf32> to vector<2x8xf32>
    %cst_2 = arith.constant 9.99999997E-7 : f32
    %3 = vector.broadcast %cst_2 : f32 to vector<2x8xf32>
    %4 = arith.cmpf oge, %2, %3 : vector<2x8xf32>
    %5 = arith.extui %4 : vector<2x8xi1> to vector<2x8xi32>
    %6 = arith.sitofp %5 : vector<2x8xi32> to vector<2x8xf32>
    %cst_3 = arith.constant dense<0.000000e+00> : vector<2xf32>
    %7 = vector.multi_reduction <add>, %6, %cst_3 [1] : vector<2x8xf32> to vector<2xf32>
    %8 = vector.shape_cast %7 : vector<2xf32> to vector<2x1xf32>
    %cst_4 = arith.constant 1.000000e+00 : f32
    %9 = vector.broadcast %cst_4 : f32 to vector<2x1xf32>
    %10 = arith.maximumf %8, %9 : vector<2x1xf32>
    %cst_5 = arith.constant dense<0.000000e+00> : vector<2x128xf32>
    %11 = vector.multi_reduction <add>, %0, %cst_5 [1] : vector<2x8x128xf32> to vector<2x128xf32>
    %12 = vector.broadcast %10 : vector<2x1xf32> to vector<2x128xf32>
    %13 = arith.divf %11, %12 : vector<2x128xf32>
    %c0_6 = arith.constant 0 : index
    %c0_7 = arith.constant 0 : index
    %14 = vector.load %arg2[%c0_6, %c0_7] : memref<128x128xf32, #tpu.memory_space<vmem>>, vector<128x128xf32>
    %cst_8 = arith.constant dense<0.000000e+00> : vector<2x128xf32>
    %15 = tpu.matmul %13, %14, %cst_8 {dimension_numbers = #tpu.dot_dimension_numbers<[1], [1], [0], [0], [0, 0, 1, 0], [], []>} : vector<2x128xf32>, vector<128x128xf32>, vector<2x128xf32> -> vector<2x128xf32>
    %16 = vector.shape_cast %15 : vector<2x128xf32> to vector<2x1x128xf32>
    %17 = vector.broadcast %16 : vector<2x1x128xf32> to vector<2x8x128xf32>
    %18 = arith.mulf %0, %17 : vector<2x8x128xf32>
    %cst_9 = arith.constant dense<0.000000e+00> : vector<2x8xf32>
    %19 = vector.multi_reduction <add>, %18, %cst_9 [2] : vector<2x8x128xf32> to vector<2x8xf32>
    %cst_10 = arith.constant dense<0xFF800000> : vector<2xf32>
    %20 = vector.multi_reduction <maximumf>, %19, %cst_10 [1] : vector<2x8xf32> to vector<2xf32>
    %21 = vector.shape_cast %20 : vector<2xf32> to vector<2x1xf32>
    %22 = vector.broadcast %21 : vector<2x1xf32> to vector<2x8xf32>
    %23 = arith.subf %19, %22 : vector<2x8xf32>
    %24 = math.exp %23 : vector<2x8xf32>
    %25 = arith.mulf %24, %6 : vector<2x8xf32>
    %cst_11 = arith.constant dense<0.000000e+00> : vector<2xf32>
    %26 = vector.multi_reduction <add>, %25, %cst_11 [1] : vector<2x8xf32> to vector<2xf32>
    %27 = vector.shape_cast %26 : vector<2xf32> to vector<2x1xf32>
    %cst_12 = arith.constant 1.000000e-30 : f32
    %28 = vector.broadcast %cst_12 : f32 to vector<2x1xf32>
    %29 = arith.maximumf %27, %28 : vector<2x1xf32>
    %30 = tpu.reciprocal %29 {approx = true} : vector<2x1xf32> -> vector<2x1xf32>
    %31 = vector.broadcast %30 : vector<2x1xf32> to vector<2x8xf32>
    %32 = arith.mulf %25, %31 : vector<2x8xf32>
    %33 = vector.shape_cast %32 : vector<2x8xf32> to vector<2x8x1xf32>
    %34 = vector.broadcast %33 : vector<2x8x1xf32> to vector<2x8x128xf32>
    %35 = arith.mulf %34, %0 : vector<2x8x128xf32>
    %cst_13 = arith.constant dense<0.000000e+00> : vector<2x128xf32>
    %36 = vector.multi_reduction <add>, %35, %cst_13 [1] : vector<2x8x128xf32> to vector<2x128xf32>
    %c0_14 = arith.constant 0 : index
    %c0_15 = arith.constant 0 : index
    %37 = vector.load %arg3[%c0_14, %c0_15] : memref<4x128xf32, #tpu.memory_space<vmem>>, vector<4x128xf32>
    %cst_16 = arith.constant dense<0.000000e+00> : vector<2x4xf32>
    %38 = tpu.matmul %36, %37, %cst_16 {dimension_numbers = #tpu.dot_dimension_numbers<[1], [1], [0], [0], [0, 0, 1, 0], [], []>} : vector<2x128xf32>, vector<4x128xf32>, vector<2x4xf32> -> vector<2x4xf32>
    %c0_17 = arith.constant 0 : index
    %c0_18 = arith.constant 0 : index
    %39 = vector.load %arg4[%c0_17, %c0_18] : memref<1x4xf32, #tpu.memory_space<vmem>>, vector<1x4xf32>
    %40 = vector.broadcast %39 : vector<1x4xf32> to vector<2x4xf32>
    %41 = arith.addf %38, %40 : vector<2x4xf32>
    %cst_19 = arith.constant dense<0xFF800000> : vector<2xf32>
    %42 = vector.multi_reduction <maximumf>, %41, %cst_19 [1] : vector<2x4xf32> to vector<2xf32>
    %43 = vector.shape_cast %42 : vector<2xf32> to vector<2x1xf32>
    %44 = vector.broadcast %43 : vector<2x1xf32> to vector<2x4xf32>
    %45 = arith.subf %41, %44 : vector<2x4xf32>
    %46 = math.exp %45 : vector<2x4xf32>
    %cst_20 = arith.constant dense<0.000000e+00> : vector<2xf32>
    %47 = vector.multi_reduction <add>, %46, %cst_20 [1] : vector<2x4xf32> to vector<2xf32>
    %48 = vector.shape_cast %47 : vector<2xf32> to vector<2x1xf32>
    %49 = vector.broadcast %48 : vector<2x1xf32> to vector<2x4xf32>
    %50 = arith.divf %46, %49 : vector<2x4xf32>
    %c0_21 = arith.constant 0 : index
    %c0_22 = arith.constant 0 : index
    %51 = vector.load %arg5[%c0_21, %c0_22] : memref<128x4xf32, #tpu.memory_space<vmem>>, vector<128x4xf32>
    %cst_23 = arith.constant dense<0.000000e+00> : vector<2x128xf32>
    %52 = tpu.matmul %50, %51, %cst_23 {dimension_numbers = #tpu.dot_dimension_numbers<[1], [1], [0], [0], [0, 0, 1, 0], [], []>} : vector<2x4xf32>, vector<128x4xf32>, vector<2x128xf32> -> vector<2x128xf32>
    %53 = tpu.concatenate %36, %52 in 1 : vector<2x128xf32>, vector<2x128xf32> -> vector<2x256xf32>
    %c0_24 = arith.constant 0 : index
    %c0_25 = arith.constant 0 : index
    %54 = vector.load %arg6[%c0_24, %c0_25] : memref<2x256xf32, #tpu.memory_space<vmem>>, vector<2x256xf32>
    tpu.vector_store %arg6[%c0_24, %c0_25], %53 {strides = array<i32>} : memref<2x256xf32, #tpu.memory_space<vmem>>, vector<2x256xf32>,
    return
  }
  func.func @transform_0(%arg0: i32) -> (i32, i32, i32) {
    %c0_i32 = arith.constant 0 : i32
    %c0_i32_0 = arith.constant 0 : i32
    %c0_i32_1 = arith.constant 0 : i32
    return %arg0, %c0_i32, %c0_i32_0 : i32, i32, i32
  }
  func.func @transform_1(%arg0: i32) -> (i32, i32) {
    %c0_i32 = arith.constant 0 : i32
    %c0_i32_0 = arith.constant 0 : i32
    %c0_i32_1 = arith.constant 0 : i32
    return %c0_i32, %c0_i32_0 : i32, i32
  }
  func.func @transform_2(%arg0: i32) -> (i32, i32) {
    %c0_i32 = arith.constant 0 : i32
    %c0_i32_0 = arith.constant 0 : i32
    %c0_i32_1 = arith.constant 0 : i32
    return %c0_i32, %c0_i32_0 : i32, i32
  }
  func.func @transform_3(%arg0: i32) -> (i32, i32) {
    %c0_i32 = arith.constant 0 : i32
    %c0_i32_0 = arith.constant 0 : i32
    %c0_i32_1 = arith.constant 0 : i32
    return %c0_i32, %c0_i32_0 : i32, i32
  }
  func.func @transform_4(%arg0: i32) -> (i32, i32) {
    %c0_i32 = arith.constant 0 : i32
    %c0_i32_0 = arith.constant 0 : i32
    %c0_i32_1 = arith.constant 0 : i32
    return %c0_i32, %c0_i32_0 : i32, i32
  }
  func.func @transform_5(%arg0: i32) -> (i32, i32) {
    %c0_i32 = arith.constant 0 : i32
    %c0_i32_0 = arith.constant 0 : i32
    return %arg0, %c0_i32 : i32, i32
  }
}

</mosaic_0001>

<llo_original>
// kernel: _abae_forward_impl.1
$region0: #{_abae_forward_impl.1}
  #allocation0 [shape = 'u32[]', space=smem, size = 0x4, offset = 0x4, fixed_abs, tag = 'smem constant byte address 0x4 - core index']
  #allocation1 [shape = 'u32[72,128]{1,0:T(1,128)}', space=vmem, size = 0x9000, scoped, tag = 'internal scratch']
  %s0 = inlined_call_operand.vmem [shape: f32[2,8,128], index: 0, kind: input, shape index: {}]
  %s1 = inlined_call_operand.vmem [shape: f32[128,128], index: 1, kind: input, shape index: {}]
  %s2 = inlined_call_operand.vmem [shape: f32[4,128], index: 2, kind: input, shape index: {}]
  %s3 = inlined_call_operand.vmem [shape: f32[1,4], index: 3, kind: input, shape index: {}]
  %s4 = inlined_call_operand.vmem [shape: f32[128,4], index: 4, kind: input, shape index: {}]
  %s5 = inlined_call_operand.vmem [shape: f32[2,256], index: 5, kind: output, shape index: {}]
  %s6 = sld [smem:[#allocation0]]
  $region30: #{_abae_forward_impl.1} parent=0
    _
  %s8 = ssub.s32 1, %s6
  %s9 = scalar_select 0, %s8, %s6
  // Predicated region
  $region2: #{_abae_forward_impl.1} parent=0 // pred_check
    _
  $region3: #{_abae_forward_impl.1} parent=0 // pred_check_branch
    %11 = sbr.rel (0) target = $region5
  $region4: #{_abae_forward_impl.1} parent=0 // pred_region
    _
  $region5: #{_abae_forward_impl.1} parent=0 // pred_fallthru
    _
  // Predicated region
  $region6: #{_abae_forward_impl.1} parent=0 // pred_check
    _
  $region7: #{_abae_forward_impl.1} parent=0 // pred_check_branch
    %13 = sbr.rel (0) target = $region9
  $region8: #{_abae_forward_impl.1} parent=0 // pred_region
    _
  $region9: #{_abae_forward_impl.1} parent=0 // pred_fallthru
    _
  // Predicated region
  $region10: #{_abae_forward_impl.1} parent=0 // pred_check
    _
  $region11: #{_abae_forward_impl.1} parent=0 // pred_check_branch
    %15 = sbr.rel (0) target = $region13
  $region12: #{_abae_forward_impl.1} parent=0 // pred_region
    _
  $region13: #{_abae_forward_impl.1} parent=0 // pred_fallthru
    _
  // Predicated region
  $region14: #{_abae_forward_impl.1} parent=0 // pred_check
    _
  $region15: #{_abae_forward_impl.1} parent=0 // pred_check_branch
    %17 = sbr.rel (0) target = $region17
  $region16: #{_abae_forward_impl.1} parent=0 // pred_region
    _
  $region17: #{_abae_forward_impl.1} parent=0 // pred_fallthru
    _
  // Predicated region
  $region18: #{_abae_forward_impl.1} parent=0 // pred_check
    _
  $region19: #{_abae_forward_impl.1} parent=0 // pred_check_branch
    %19 = sbr.rel (0) target = $region21
  $region20: #{_abae_forward_impl.1} parent=0 // pred_region
    _
  $region21: #{_abae_forward_impl.1} parent=0 // pred_fallthru
    _
  %v20 = vld [vmem:[%s0] sm:$0xff]
  %v21 = vld [vmem:[%s0 + $0x8] sm:$0xff]
  %v22 = vand.u32 2147483647, %v20
  %v23 = vand.u32 2147483647, %v21
  %24 = vmax.xlane.f32.xlu0 %v22
  %v25 = vpop.xlane.xlu0 %24
  %26 = vmax.xlane.f32.xlu0 %v23
  %v27 = vpop.xlane.xlu0 %26
  %vm28 = vcmp.ge.f32.partialorder %v25, 1e-06
  %vm29 = vcmp.ge.f32.partialorder %v27, 1e-06
  %v30 = vsel %vm28, 1, 0
  %v31 = vsel %vm29, 1, 0
  %v32 = vcvt.s32.f32 %v30
  %v33 = vcvt.s32.f32 %v31
  %v36 = vlaneseq
  %v37 = vand.u32 %v36, 127
  %v38 = vperm.slane %v32, %v37
  %v39 = vperm.slane %v33, %v37
  %vm40 = vcmask 1041409
  %v41 = vsel %vm40, %v39, %v38
  %vm43 = vcmask 58368
  %v44 = vsel %vm43, %v41, 0.0
  %45 = vadd.xlane.f32.xlu0 %v44
  %v46 = vpop.xlane.xlu0 %45
  %v47 = vmax.f32 %v46, 1.0
  %v48 = vrot.slane %v20, 4
  %v49 = vadd.f32 %v20, %v48
  %v50 = vrot.slane %v49, 2
  %v51 = vadd.f32 %v49, %v50
  %v52 = vrot.slane %v51, 1
  %v53 = vadd.f32 %v51, %v52
  %v54 = vrot.slane %v21, 4
  %v55 = vadd.f32 %v21, %v54
  %v56 = vrot.slane %v55, 2
  %v57 = vadd.f32 %v55, %v56
  %v58 = vrot.slane %v57, 1
  %v59 = vadd.f32 %v57, %v58
  %v61 = vrot.slane %v47, 1
  %v64 = vrcp.pop %v47
  %v65 = vmul.f32 %v47, %v64
  %v66 = vsub.f32 1.0, %v65
  %v67 = vmul.f32 %v64, %v66
  %v68 = vadd.f32 %v64, %v67
  %vm69 = vweird.f32 %v47
  %vm70 = vweird.f32 %v64
  %vm71 = vmor %vm69, %vm70
  %v72 = vsel %vm71, %v64, %v68
  %v73 = vand.u32 2147483647, %v47
  %vm74 = vcmp.eq.f32.partialorder %v73, 8.507059e+37
  %v75 = vand.u32 %v47, 2147483648
  %v76 = vor.u32 1.1754944e-38, %v75
  %v77 = vsel %vm74, %v76, %v72
  %v78 = vmul.f32 %v53, %v77
  %v79 = vrcp.pop %v61
  %v80 = vmul.f32 %v61, %v79
  %v81 = vsub.f32 1.0, %v80
  %v82 = vmul.f32 %v79, %v81
  %v83 = vadd.f32 %v79, %v82
  %vm84 = vweird.f32 %v61
  %vm85 = vweird.f32 %v79
  %vm86 = vmor %vm84, %vm85
  %v87 = vsel %vm86, %v79, %v83
  %v88 = vand.u32 2147483647, %v61
  %vm89 = vcmp.eq.f32.partialorder %v88, 8.507059e+37
  %v90 = vand.u32 %v61, 2147483648
  %v91 = vor.u32 1.1754944e-38, %v90
  %v92 = vsel %vm89, %v91, %v87
  %v93 = vmul.f32 %v59, %v92
  %v94 = vld [vmem:[%s1] sm:$0xff]
  %v95 = vld [vmem:[%s1 + $0x8] sm:$0xff]
  %v96 = vld [vmem:[%s1 + $0x10] sm:$0xff]
  %v97 = vld [vmem:[%s1 + $0x18] sm:$0xff]
  %v98 = vld [vmem:[%s1 + $0x20] sm:$0xff]
  %v99 = vld [vmem:[%s1 + $0x28] sm:$0xff]
  %v100 = vld [vmem:[%s1 + $0x30] sm:$0xff]
  %v101 = vld [vmem:[%s1 + $0x38] sm:$0xff]
  %v102 = vld [vmem:[%s1 + $0x40] sm:$0xff]
  %v103 = vld [vmem:[%s1 + $0x48] sm:$0xff]
  %v104 = vld [vmem:[%s1 + $0x50] sm:$0xff]
  %v105 = vld [vmem:[%s1 + $0x58] sm:$0xff]
  %v106 = vld [vmem:[%s1 + $0x60] sm:$0xff]
  %v107 = vld [vmem:[%s1 + $0x68] sm:$0xff]
  %v108 = vld [vmem:[%s1 + $0x70] sm:$0xff]
  %v109 = vld [vmem:[%s1 + $0x78] sm:$0xff]
  %v112 = vrot.slane %v93, 7
  %v113 = vsel %vm40, %v112, %v78
  %115 = vmatpush.xpose.msra.mxu0 %v109
  %116 = vmatpush.xpose.msra.mxu0 %v108
  %117 = vmatpush.xpose.msra.mxu0 %v107
  %118 = vmatpush.xpose.msra.mxu0 %v106
  %119 = vmatpush.xpose.msra.mxu0 %v105
  %120 = vmatpush.xpose.msra.mxu0 %v104
  %121 = vmatpush.xpose.msra.mxu0 %v103
  %122 = vmatpush.xpose.msra.mxu0 %v102
  %123 = vmatpush.xpose.msra.mxu0 %v101
  %124 = vmatpush.xpose.msra.mxu0 %v100
  %125 = vmatpush.xpose.msra.mxu0 %v99
  %126 = vmatpush.xpose.msra.mxu0 %v98
  %127 = vmatpush.xpose.msra.mxu0 %v97
  %128 = vmatpush.xpose.msra.mxu0 %v96
  %129 = vmatpush.xpose.msra.mxu0 %v95
  %130 = vmatpush.xpose.msra.mxu0 %v94
  %131 = vmatmul.f32.gmra.mxu0 %v113
  %v132 = vpop.f32.mrf.mxu0
  %v133 = vadd.f32 0.0, %v132
  %134 = vdwg.mxu0
  %v136 = vrot.slane %v133, 1
  %v137 = vperm.slane %v133, 0
  %v138 = vperm.slane %v136, 0
  %v141 = vmul.f32 %v20, %v137
  %v142 = vmul.f32 %v21, %v138
  %143 = vadd.xlane.f32.xlu0 %v141
  %v144 = vpop.xlane.xlu0 %143
  %145 = vadd.xlane.f32.xlu0 %v142
  %v146 = vpop.xlane.xlu0 %145
  %v149 = vperm.slane %v144, %v37
  %v150 = vperm.slane %v146, %v37
  %v151 = vsel %vm40, %v150, %v149
  %v153 = vsel %vm43, %v151, -inf
  %154 = vmax.xlane.f32.xlu0 %v153
  %v155 = vpop.xlane.xlu0 %154
  %v157 = vperm.slane %v155, 0
  %v158 = vperm.slane %v155, 1
  %v161 = vsub.f32 %v144, %v157
  %v162 = vsub.f32 %v146, %v158
  %v163 = vmul.f32 %v161, 1.442695
  %v164 = vpow.pop %v163
  %v165 = vmul.f32 %v162, 1.442695
  %v166 = vpow.pop %v165
  %v167 = vmul.f32 %v164, %v32
  %v168 = vmul.f32 %v166, %v33
  %171 = vset.pattern.permute.xlu0 0
  %172 = vperm.xlu0 %171, %v167
  %v173 = vpop.permute.xlu0 %172
  %174 = vset.pattern.permute.xlu0 0
  %175 = vperm.xlu0 %174, %v168
  %v176 = vpop.permute.xlu0 %175
  %v177 = vperm.slane %v173, %v37
  %v178 = vperm.slane %v176, %v37
  %v179 = vsel %vm40, %v178, %v177
  %v181 = vsel %vm43, %v179, 0.0
  %182 = vadd.xlane.f32.xlu0 %v181
  %v183 = vpop.xlane.xlu0 %182
  %v184 = vmax.f32 %v183, 1e-30
  %v185 = vrcp.pop %v184
  %v187 = vperm.slane %v185, 0
  %v188 = vperm.slane %v185, 1
  %v191 = vmul.f32 %v167, %v187
  %v192 = vmul.f32 %v168, %v188
  %194 = vset.pattern.permute.xlu0 0
  %195 = vperm.xlu0 %194, %v191
  %v196 = vpop.permute.xlu0 %195
  %199 = vset.pattern.permute.xlu0 0
  %200 = vperm.xlu0 %199, %v192
  %v201 = vpop.permute.xlu0 %200
  %v203 = vmul.f32 %v196, %v20
  %v204 = vmul.f32 %v201, %v21
  %v205 = vrot.slane %v203, 4
  %v206 = vadd.f32 %v203, %v205
  %v207 = vrot.slane %v206, 2
  %v208 = vadd.f32 %v206, %v207
  %v209 = vrot.slane %v208, 1
  %v210 = vadd.f32 %v208, %v209
  %v211 = vrot.slane %v204, 4
  %v212 = vadd.f32 %v204, %v211
  %v213 = vrot.slane %v212, 2
  %v214 = vadd.f32 %v212, %v213
  %v215 = vrot.slane %v214, 1
  %v216 = vadd.f32 %v214, %v215
  %v217 = vld [vmem:[%s2] sm:$0xf]
  %v218 = vld [vmem:[%s3] sm:$0x1]
  %v220 = vperm.slane %v218, 0
  %v224 = vsel %vm40, %v216, %v210
  %226 = vmatpush.xpose.msra.mxu0 0.0
  %227 = vmatpush.xpose.msra.mxu0 0.0
  %228 = vmatpush.xpose.msra.mxu0 0.0
  %229 = vmatpush.xpose.msra.mxu0 0.0
  %230 = vmatpush.xpose.msra.mxu0 0.0
  %231 = vmatpush.xpose.msra.mxu0 0.0
  %232 = vmatpush.xpose.msra.mxu0 0.0
  %233 = vmatpush.xpose.msra.mxu0 0.0
  %234 = vmatpush.xpose.msra.mxu0 0.0
  %235 = vmatpush.xpose.msra.mxu0 0.0
  %236 = vmatpush.xpose.msra.mxu0 0.0
  %237 = vmatpush.xpose.msra.mxu0 0.0
  %238 = vmatpush.xpose.msra.mxu0 0.0
  %239 = vmatpush.xpose.msra.mxu0 0.0
  %240 = vmatpush.xpose.msra.mxu0 0.0
  %241 = vmatpush.xpose.msra.mxu0 %v217
  %242 = vmatmul.f32.gmra.mxu0 %v224
  %v243 = vpop.f32.mrf.mxu0
  %v244 = vadd.f32 %v220, %v243
  %245 = vdwg.mxu0
  %vm246 = vcmask 25600
  %v247 = vsel %vm246, %v244, -inf
  %248 = vmax.xlane.f32.xlu0 %v247
  %v249 = vpop.xlane.xlu0 %248
  %v250 = vsub.f32 %v244, %v249
  %v251 = vmul.f32 %v250, 1.442695
  %v252 = vpow.pop %v251
  %v253 = vsel %vm246, %v252, 0.0
  %254 = vadd.xlane.f32.xlu0 %v253
  %v255 = vpop.xlane.xlu0 %254
  %v256 = vrcp.pop %v255
  %v257 = vmul.f32 %v255, %v256
  %v258 = vsub.f32 1.0, %v257
  %v259 = vmul.f32 %v256, %v258
  %v260 = vadd.f32 %v256, %v259
  %vm261 = vweird.f32 %v255
  %vm262 = vweird.f32 %v256
  %vm263 = vmor %vm261, %vm262
  %v264 = vsel %vm263, %v256, %v260
  %v265 = vand.u32 2147483647, %v255
  %vm266 = vcmp.eq.f32.partialorder %v265, 8.507059e+37
  %v267 = vand.u32 %v255, 2147483648
  %v268 = vor.u32 1.1754944e-38, %v267
  %v269 = vsel %vm266, %v268, %v264
  %v270 = vmul.f32 %v252, %v269
  %v271 = vld [vmem:[%s4] sm:$0xff]
  %v272 = vld [vmem:[%s4 + $0x8] sm:$0xff]
  %v273 = vld [vmem:[%s4 + $0x10] sm:$0xff]
  %v274 = vld [vmem:[%s4 + $0x18] sm:$0xff]
  %v275 = vld [vmem:[%s4 + $0x20] sm:$0xff]
  %v276 = vld [vmem:[%s4 + $0x28] sm:$0xff]
  %v277 = vld [vmem:[%s4 + $0x30] sm:$0xff]
  %v278 = vld [vmem:[%s4 + $0x38] sm:$0xff]
  %v279 = vld [vmem:[%s4 + $0x40] sm:$0xff]
  %v280 = vld [vmem:[%s4 + $0x48] sm:$0xff]
  %v281 = vld [vmem:[%s4 + $0x50] sm:$0xff]
  %v282 = vld [vmem:[%s4 + $0x58] sm:$0xff]
  %v283 = vld [vmem:[%s4 + $0x60] sm:$0xff]
  %v284 = vld [vmem:[%s4 + $0x68] sm:$0xff]
  %v285 = vld [vmem:[%s4 + $0x70] sm:$0xff]
  %v286 = vld [vmem:[%s4 + $0x78] sm:$0xff]
  %vm287 = vcmask 31744
  %v289 = vsel %vm287, %v270, 0
  %v292 = vsel %vm287, %v271, 0
  %v295 = vsel %vm287, %v272, 0
  %v298 = vsel %vm287, %v273, 0
  %v301 = vsel %vm287, %v274, 0
  %v304 = vsel %vm287, %v275, 0
  %v307 = vsel %vm287, %v276, 0
  %v310 = vsel %vm287, %v277, 0
  %v313 = vsel %vm287, %v278, 0
  %v316 = vsel %vm287, %v279, 0
  %v319 = vsel %vm287, %v280, 0
  %v322 = vsel %vm287, %v281, 0
  %v325 = vsel %vm287, %v282, 0
  %v328 = vsel %vm287, %v283, 0
  %v331 = vsel %vm287, %v284, 0
  %v334 = vsel %vm287, %v285, 0
  %v337 = vsel %vm287, %v286, 0
  %339 = vmatpush.xpose.msra.mxu0 %v337
  %340 = vmatpush.xpose.msra.mxu0 %v334
  %341 = vmatpush.xpose.msra.mxu0 %v331
  %342 = vmatpush.xpose.msra.mxu0 %v328
  %343 = vmatpush.xpose.msra.mxu0 %v325
  %344 = vmatpush.xpose.msra.mxu0 %v322
  %345 = vmatpush.xpose.msra.mxu0 %v319
  %346 = vmatpush.xpose.msra.mxu0 %v316
  %347 = vmatpush.xpose.msra.mxu0 %v313
  %348 = vmatpush.xpose.msra.mxu0 %v310
  %349 = vmatpush.xpose.msra.mxu0 %v307
  %350 = vmatpush.xpose.msra.mxu0 %v304
  %351 = vmatpush.xpose.msra.mxu0 %v301
  %352 = vmatpush.xpose.msra.mxu0 %v298
  %353 = vmatpush.xpose.msra.mxu0 %v295
  %354 = vmatpush.xpose.msra.mxu0 %v292
  %355 = vmatmul.f32.gmra.mxu0 %v289
  %v356 = vpop.f32.mrf.mxu0
  %v357 = vadd.f32 0.0, %v356
  %358 = vdwg.mxu0
  %v360 = vrot.slane %v357, 6
  %vm361 = vcmask 1041408
  %v362 = vsel %vm361, %v224, %v360
  %364 = vst [vmem:[%s5] sm:$0xf] %v362
  // Predicated region
  $region22: #{_abae_forward_impl.1} parent=0 // pred_check
    _
  $region23: #{_abae_forward_impl.1} parent=0 // pred_check_branch
    %366 = sbr.rel (0) target = $region25
  $region24: #{_abae_forward_impl.1} parent=0 // pred_region
    _
  $region25: #{_abae_forward_impl.1} parent=0 // pred_fallthru
    _
  // Predicated region
  $region26: #{_abae_forward_impl.1} parent=0 // pred_check
    _
  $region27: #{_abae_forward_impl.1} parent=0 // pred_check_branch
    %368 = sbr.rel (0) target = $region29
  $region28: #{_abae_forward_impl.1} parent=0 // pred_region
    _
  $region29: #{_abae_forward_impl.1} parent=0 // pred_fallthru
    _

</llo_original>
